<compile_context>
chip_gen: v7x
topology: tpu7x:2x2x1
jax: 0.10.0
libtpu: 0.0.40
codegen_flags: <defaults>
</compile_context>

<pallas_src>
import functools

import jax
import jax.numpy as jnp
from jax.experimental import pallas as pl
from jax.experimental.pallas import tpu as pltpu


def _round_up(x: int, m: int) -> int:
    return (x + m - 1) // m * m


def _round_down(x: int, m: int) -> int:
    return max(m, x // m * m)


# ---------------------------------------------------------------------------
# Kernels
# ---------------------------------------------------------------------------
def _matmul_kernel_single_k(x_ref, w_ref, o_ref):
    """K fits in one tile: no reduction grid axis, no accumulator."""
    o_ref[...] = jnp.dot(
        x_ref[...], w_ref[...], preferred_element_type=jnp.float32
    ).astype(o_ref.dtype)


def _matmul_kernel_acc_out(x_ref, w_ref, o_ref):
    """Tiled K, f32 output: accumulate directly into the resident out block."""
    @pl.when(pl.program_id(2) == 0)
    def _():
        o_ref[...] = jnp.zeros_like(o_ref)

    o_ref[...] += jnp.dot(
        x_ref[...], w_ref[...], preferred_element_type=jnp.float32
    )


def _matmul_kernel_acc_scratch(x_ref, w_ref, o_ref, acc_ref):
    """Tiled K, non-f32 output: f32 VMEM accumulator + finalize cast."""
    k = pl.program_id(2)

    @pl.when(k == 0)
    def _():
        acc_ref[...] = jnp.zeros_like(acc_ref)

    acc_ref[...] += jnp.dot(
        x_ref[...], w_ref[...], preferred_element_type=jnp.float32
    )

    @pl.when(k == pl.num_programs(2) - 1)
    def _():
        o_ref[...] = acc_ref[...].astype(o_ref.dtype)


# ---------------------------------------------------------------------------
# Wrapper
# ---------------------------------------------------------------------------
@functools.partial(
    jax.jit, static_argnames=("tm", "tn", "tk", "compute_dtype")
)
def lr_forward(x, w_t, *, tm: int = 512, tn: int = 512, tk: int = 1024,
               compute_dtype=None):
    """Bias-free linear: returns x @ w_t.

    x:   [batch, input_dim]
    w_t: [input_dim, output_dim]   (PyTorch weight, pre-transposed once)
    compute_dtype: optionally cast inputs (e.g. jnp.bfloat16) for the MXU;
                   accumulation stays f32 and the output keeps x's dtype.
    """
    M, K = x.shape
    K2, N = w_t.shape
    assert K == K2, "input_dim mismatch between x and weight"

    out_dtype = x.dtype
    if compute_dtype is not None:
        x = x.astype(compute_dtype)
        w_t = w_t.astype(compute_dtype)

    in_itemsize = jnp.dtype(x.dtype).itemsize
    out_itemsize = jnp.dtype(out_dtype).itemsize
    sublane = {4: 8, 2: 16, 1: 32}.get(in_itemsize, 8)   # dtype-aware min rows
    lane = 128

    # ---- tile selection (no host padding of M or N) ----
    # M: single i-block when the batch fits -> W streamed from HBM exactly once.
    if M <= tm:
        tm = M                       # block == full dim: no sublane constraint
    else:
        tm = _round_down(tm, sublane)
    grid_m = pl.cdiv(M, tm)

    if N <= tn:
        tn = N                       # block == full dim
    else:
        tn = _round_down(tn, lane)
    # v7x megacore: if the i-axis collapsed to one block, split N so at least
    # one "parallel" axis has >=2 blocks (otherwise the second TC idles).
    if grid_m == 1 and N >= 2 * lane:
        tn = min(tn, _round_up(pl.cdiv(N, 2), lane))
    grid_n = pl.cdiv(N, tn)

    if K <= tk:
        tk = K                       # full-K resident: drop reduction grid axis
    else:
        tk = _round_down(tk, lane)   # 128 satisfies both lane (X) & sublane (W)
    grid_k = pl.cdiv(K, tk)

    # Only the reduction dim is zero-padded: Pallas clips out-of-bounds output
    # writes (so M/N boundary garbage is harmless), but out-of-bounds READS are
    # not guaranteed zero, and K garbage would corrupt the valid sum.
    Kp = grid_k * tk
    if Kp != K:
        x = jnp.pad(x, ((0, 0), (0, Kp - K)))
        w_t = jnp.pad(w_t, ((0, Kp - K), (0, 0)))

    cost = pl.CostEstimate(
        flops=2 * M * N * Kp,
        bytes_accessed=(grid_n * M * Kp + grid_m * Kp * N) * in_itemsize
        + M * N * out_itemsize,
        transcendentals=0,
    )

    if grid_k == 1:
        grid = (grid_m, grid_n)
        in_specs = [
            pl.BlockSpec((tm, Kp), lambda i, j: (i, 0)),
            pl.BlockSpec((Kp, tn), lambda i, j: (0, j)),
        ]
        out_specs = pl.BlockSpec((tm, tn), lambda i, j: (i, j))
        kernel = _matmul_kernel_single_k
        scratch = []
        dim_sem = ("parallel", "parallel")
    else:
        grid = (grid_m, grid_n, grid_k)
        in_specs = [
            pl.BlockSpec((tm, tk), lambda i, j, k: (i, k)),
            # TODO(synk): sweep pipeline_mode=pl.Buffered(3) on the weight spec
            # if weight DMA is still exposed in the small-batch mem-bound case.
            pl.BlockSpec((tk, tn), lambda i, j, k: (k, j)),
        ]
        out_specs = pl.BlockSpec((tm, tn), lambda i, j, k: (i, j))
        dim_sem = ("parallel", "parallel", "arbitrary")
        if out_dtype == jnp.float32:
            kernel = _matmul_kernel_acc_out      # accumulate into o_ref itself
            scratch = []
        else:
            kernel = _matmul_kernel_acc_scratch
            scratch = [pltpu.VMEM((tm, tn), jnp.float32)]

    # ~11 MiB double-buffered at default 512/512/1024 f32 tiles. 48 MiB raises
    # v5e's 16 MiB / v6e's 32 MiB default scoped limit and still leaves
    # headroom on v7x's 64 MiB physical VMEM per TensorCore.
    compiler_params = pltpu.CompilerParams(
        dimension_semantics=dim_sem,
        vmem_limit_bytes=48 * 1024 * 1024,
    )

    return pl.pallas_call(
        kernel,
        out_shape=jax.ShapeDtypeStruct((M, N), out_dtype),
        grid_spec=pltpu.PrefetchScalarGridSpec(
            num_scalar_prefetch=0,
            grid=grid,
            in_specs=in_specs,
            out_specs=out_specs,
            scratch_shapes=scratch,
        ),
        compiler_params=compiler_params,
        cost_estimate=cost,
    )(x, w_t)


def init_lr_params(key, input_dim: int, output_dim: int, dtype=jnp.float32):
    """Mimics nn.Linear(input_dim, output_dim, bias=False) init.

    Returns the weight already transposed to [input_dim, output_dim] so the
    forward pass never pays a per-call HBM transpose.
    """
    bound = 1.0 / (input_dim ** 0.5)
    weight = jax.random.uniform(
        key, (output_dim, input_dim), minval=-bound, maxval=bound, dtype=dtype
    )
    return {"weight": weight, "weight_t": weight.T}


if __name__ == "__main__":
    key = jax.random.PRNGKey(0)
    k1, k2, k3, k4 = jax.random.split(key, 4)

    # --- small demo shapes matching the module's forward: X [batch, input_dim]
    batch, input_dim, output_dim = 8, 32, 16
    x = jax.random.normal(k1, (batch, input_dim), dtype=jnp.float32)
    params = init_lr_params(k2, input_dim, output_dim, dtype=jnp.float32)

    out = jax.block_until_ready(lr_forward(x, params["weight_t"]))
    ref = jnp.matmul(x, params["weight"].T, precision=jax.lax.Precision.HIGHEST)
    assert out.shape == (batch, output_dim)
    assert jnp.allclose(out, ref, atol=1e-5, rtol=1e-5)

    # --- bf16 compute path (halves HBM weight traffic, native bf16 MXU) ------
    out_bf16 = jax.block_until_ready(
        lr_forward(x, params["weight_t"], compute_dtype=jnp.bfloat16)
    )
    assert jnp.allclose(out_bf16, ref, atol=5e-2, rtol=5e-2)

    # --- exercise tiled-K + boundary-clipped M/N path with small tiles -------
    M2, K2_, N2 = 72, 200, 200
    x2 = jax.random.normal(k3, (M2, K2_), dtype=jnp.float32)
    w2 = jax.random.uniform(
        k4, (N2, K2_), minval=-1.0, maxval=1.0, dtype=jnp.float32
    ) / (K2_ ** 0.5)
    out2 = jax.block_until_ready(lr_forward(x2, w2.T, tm=64, tn=128, tk=128))
    ref2 = jnp.matmul(x2, w2.T, precision=jax.lax.Precision.HIGHEST)
    assert jnp.allclose(out2, ref2, atol=1e-4, rtol=1e-4)

    print("KERNEL_OK")
</pallas_src>

<mosaic_0001>
module attributes {stable_mosaic.version = 11 : i64} {
  func.func @_matmul_kernel_single_k(%arg0: i32, %arg1: i32, %arg2: memref<8x32xf32, #tpu.memory_space<vmem>>, %arg3: memref<32x16xf32, #tpu.memory_space<vmem>>, %arg4: memref<8x16xf32, #tpu.memory_space<vmem>>) attributes {dimension_semantics = [#tpu.dimension_semantics<parallel>, #tpu.dimension_semantics<parallel>], iteration_bounds = array<i64: 1, 1>, scalar_prefetch = 0 : i64, scratch_operands = 0 : i64, tpu.core_type = #tpu.core_type<tc>, window_params = [{transform_indices = @transform_0, window_bounds = array<i64: 8, 32>}, {transform_indices = @transform_1, window_bounds = array<i64: 32, 16>}, {transform_indices = @transform_2, window_bounds = array<i64: 8, 16>}]} {
    %c0 = arith.constant 0 : index
    %c0_0 = arith.constant 0 : index
    %0 = vector.load %arg2[%c0, %c0_0] : memref<8x32xf32, #tpu.memory_space<vmem>>, vector<8x32xf32>
    %c0_1 = arith.constant 0 : index
    %c0_2 = arith.constant 0 : index
    %1 = vector.load %arg3[%c0_1, %c0_2] : memref<32x16xf32, #tpu.memory_space<vmem>>, vector<32x16xf32>
    %cst = arith.constant dense<0.000000e+00> : vector<8x16xf32>
    %2 = tpu.matmul %0, %1, %cst {dimension_numbers = #tpu.dot_dimension_numbers<[1], [0], [0], [1], [0, 0, 1, 1], [], []>} : vector<8x32xf32>, vector<32x16xf32>, vector<8x16xf32> -> vector<8x16xf32>
    %c0_3 = arith.constant 0 : index
    %c0_4 = arith.constant 0 : index
    %3 = vector.load %arg4[%c0_3, %c0_4] : memref<8x16xf32, #tpu.memory_space<vmem>>, vector<8x16xf32>
    tpu.vector_store %arg4[%c0_3, %c0_4], %2 {strides = array<i32>} : memref<8x16xf32, #tpu.memory_space<vmem>>, vector<8x16xf32>,
    return
  }
  func.func @transform_0(%arg0: i32, %arg1: i32) -> (i32, i32) {
    %c0_i32 = arith.constant 0 : i32
    %c0_i32_0 = arith.constant 0 : i32
    return %arg0, %c0_i32 : i32, i32
  }
  func.func @transform_1(%arg0: i32, %arg1: i32) -> (i32, i32) {
    %c0_i32 = arith.constant 0 : i32
    %c0_i32_0 = arith.constant 0 : i32
    return %c0_i32, %arg1 : i32, i32
  }
  func.func @transform_2(%arg0: i32, %arg1: i32) -> (i32, i32) {
    %c0_i32 = arith.constant 0 : i32
    return %arg0, %arg1 : i32, i32
  }
}

</mosaic_0001>

<llo_original>
// kernel: lr_forward.1
$region0: #{lr_forward.1}
  #allocation0 [shape = 'u32[]', space=smem, size = 0x4, offset = 0x4, fixed_abs, tag = 'smem constant byte address 0x4 - core index']
  #allocation1 [shape = 'u32[144,128]{1,0:T(1,128)}', space=vmem, size = 0x12000, scoped, tag = 'internal scratch']
  %s0 = inlined_call_operand.vmem [shape: f32[8,32], index: 0, kind: input, shape index: {}]
  %s1 = inlined_call_operand.vmem [shape: f32[32,16], index: 1, kind: input, shape index: {}]
  %s2 = inlined_call_operand.hbm [shape: f32[8,16], index: 2, kind: output, shape index: {}]
  %s3 = sld [smem:[#allocation0]]
  $region18: #{lr_forward.1} parent=0
    _
  %s5 = ssub.s32 1, %s3
  %s6 = scalar_select 0, %s5, %s3
  $region1: #{lr_forward.1} parent=0
    #allocation2 [shape = 'u8[4096]{0}', space=vmem, size = 0x1000, scoped, tag = 'output window, operand 0, single buffered']
    #allocation3 [shape = 's32[1]{0}', space=sflag, size = 0x4, scoped, tag = 'scoped memory for lr_forward.1']
    %7 = vsyncpa [#allocation3], 0
    // Predicated region
    $region2: #{lr_forward.1} parent=1 // pred_check
      _
    $region3: #{lr_forward.1} parent=1 // pred_check_branch
      %9 = sbr.rel (0) target = $region5
    $region4: #{lr_forward.1} parent=1 // pred_region
      _
    $region5: #{lr_forward.1} parent=1 // pred_fallthru
      _
    // Predicated region
    $region6: #{lr_forward.1} parent=1 // pred_check
      _
    $region7: #{lr_forward.1} parent=1 // pred_check_branch
      %11 = sbr.rel (0) target = $region9
    $region8: #{lr_forward.1} parent=1 // pred_region
      _
    $region9: #{lr_forward.1} parent=1 // pred_fallthru
      _
    %v12 = vld [vmem:[%s0] sm:$0xff]
    %v13 = vld [vmem:[%s1] sm:$0xff]
    %v14 = vld [vmem:[%s1 + $0x8] sm:$0xff]
    %v15 = vld [vmem:[%s1 + $0x10] sm:$0xff]
    %v16 = vld [vmem:[%s1 + $0x18] sm:$0xff]
    %vm17 = vcmask 261120
    %v19 = vsel %vm17, %v12, 0
    %21 = vmatprep.subr.mxu0 0.0
    %22 = vmatpush1.msra.mxu0 %v13
    %23 = vmatprep.subr.mxu0 0.0
    %24 = vmatpush1.msra.mxu0 %v14
    %25 = vmatprep.subr.mxu0 0.0
    %26 = vmatpush1.msra.mxu0 %v15
    %27 = vmatprep.subr.mxu0 0.0
    %28 = vmatpush1.msra.mxu0 %v16
    %29 = vmatprep.subr.mxu0 0.0
    %30 = vmatpush1.msra.mxu0 0.0
    %31 = vmatprep.subr.mxu0 0.0
    %32 = vmatpush1.msra.mxu0 0.0
    %33 = vmatprep.subr.mxu0 0.0
    %34 = vmatpush1.msra.mxu0 0.0
    %35 = vmatprep.subr.mxu0 0.0
    %36 = vmatpush1.msra.mxu0 0.0
    %37 = vmatprep.subr.mxu0 0.0
    %38 = vmatpush1.msra.mxu0 0.0
    %39 = vmatprep.subr.mxu0 0.0
    %40 = vmatpush1.msra.mxu0 0.0
    %41 = vmatprep.subr.mxu0 0.0
    %42 = vmatpush1.msra.mxu0 0.0
    %43 = vmatprep.subr.mxu0 0.0
    %44 = vmatpush1.msra.mxu0 0.0
    %45 = vmatprep.subr.mxu0 0.0
    %46 = vmatpush1.msra.mxu0 0.0
    %47 = vmatprep.subr.mxu0 0.0
    %48 = vmatpush1.msra.mxu0 0.0
    %49 = vmatprep.subr.mxu0 0.0
    %50 = vmatpush1.msra.mxu0 0.0
    %51 = vmatprep.subr.mxu0 0.0
    %52 = vmatpush1.msra.mxu0 0.0
    %53 = vmatprep.subr.mxu0 0.0
    %54 = vmatpush1.msra.mxu0 0.0
    %55 = vmatprep.subr.mxu0 0.0
    %56 = vmatpush1.msra.mxu0 0.0
    %57 = vmatprep.subr.mxu0 0.0
    %58 = vmatpush1.msra.mxu0 0.0
    %59 = vmatprep.subr.mxu0 0.0
    %60 = vmatpush1.msra.mxu0 0.0
    %61 = vmatprep.subr.mxu0 0.0
    %62 = vmatpush1.msra.mxu0 0.0
    %63 = vmatprep.subr.mxu0 0.0
    %64 = vmatpush1.msra.mxu0 0.0
    %65 = vmatprep.subr.mxu0 0.0
    %66 = vmatpush1.msra.mxu0 0.0
    %67 = vmatprep.subr.mxu0 0.0
    %68 = vmatpush1.msra.mxu0 0.0
    %69 = vmatprep.subr.mxu0 0.0
    %70 = vmatpush1.msra.mxu0 0.0
    %71 = vmatprep.subr.mxu0 0.0
    %72 = vmatpush1.msra.mxu0 0.0
    %73 = vmatprep.subr.mxu0 0.0
    %74 = vmatpush1.msra.mxu0 0.0
    %75 = vmatprep.subr.mxu0 0.0
    %76 = vmatpush1.msra.mxu0 0.0
    %77 = vmatprep.subr.mxu0 0.0
    %78 = vmatpush1.msra.mxu0 0.0
    %79 = vmatprep.subr.mxu0 0.0
    %80 = vmatpush1.msra.mxu0 0.0
    %81 = vmatprep.subr.mxu0 0.0
    %82 = vmatpush1.msra.mxu0 0.0
    %83 = vmatprep.subr.mxu0 0.0
    %84 = vmatpush1.msra.mxu0 0.0
    %85 = vmatprep.mubr.f32.mxu0 0.0
    %86 = vmatmul.mubr.f32.gmra.mrb[0].mxu0 %v19
    %v87 = vpop.f32.mrb[0].mxu0
    %v88 = vadd.f32 0.0, %v87
    %v89 = vpop.f32.mrb[0].mxu0
    %90 = vdwg.mxu0
    %vm91 = vcmask 130048
    %92 = vst.msk [vmem:[#allocation2] sm:$0xff] %vm91, %v88
    // Predicated region
    $region10: #{lr_forward.1} parent=1 // pred_check
      _
    $region11: #{lr_forward.1} parent=1 // pred_check_branch
      %94 = sbr.rel (0) target = $region13
    $region12: #{lr_forward.1} parent=1 // pred_region
      %s96 = ssub.s32 128, 128
      %97 = vsyncadd [#allocation3], %s96
      %s99 = sshll.u32 [#allocation2], 4
      %s100 = int_to_ptr.vmem [resolvable:$true] %s99
      %102 = dma.vmem_to_hbm [thread:$0]  %s100, 128, %s2, [#allocation3]
    $region13: #{lr_forward.1} parent=1 // pred_fallthru
      _
    // Predicated region
    $region14: #{lr_forward.1} parent=1 // pred_check
      _
    $region15: #{lr_forward.1} parent=1 // pred_check_branch
      %104 = sbr.rel (0) target = $region17
    $region16: #{lr_forward.1} parent=1 // pred_region
      %105 = dma.done [#allocation3], 128
    $region17: #{lr_forward.1} parent=1 // pred_fallthru
      _
    %106 = vsyncpa [#allocation3], 1

</llo_original>
